<compile_context>
chip_gen: v7x
topology: tpu7x:2x2x1
jax: 0.10.0
libtpu: 0.0.40
codegen_flags: <defaults>
</compile_context>

<pallas_src>
import jax
import jax.numpy as jnp
from jax import lax
from jax.experimental import pallas as pl
from jax.experimental.pallas import tpu as pltpu

_SQRT_HALF = 0.7071067811865476


def _gelu(x, approximate):
    if approximate:
        # Optional tanh-approximate GELU (EUP path); changes numerics slightly.
        return jax.nn.gelu(x, approximate=True)
    # nn.GELU() default: 0.5 * x * (1 + erf(x / sqrt(2))), applied in f32.
    return 0.5 * x * (1.0 + lax.erf(x * _SQRT_HALF))


# ----------------------------------------------------------------------------
# Kernels
# ----------------------------------------------------------------------------
def _make_fused_kernel(approximate_gelu):
    """grid = (row_tiles,): both Linears + GELU fused, no VMEM scratch."""
    def kernel(x_ref, w1_ref, b1_ref, w2_ref, b2_ref, o_ref):
        h = jnp.dot(x_ref[...], w1_ref[...], preferred_element_type=jnp.float32)
        h = _gelu(h + b1_ref[...].astype(jnp.float32), approximate_gelu)
        o = jnp.dot(h.astype(w2_ref.dtype), w2_ref[...],
                    preferred_element_type=jnp.float32)
        o_ref[...] = (o + b2_ref[...].astype(jnp.float32)).astype(o_ref.dtype)
    return kernel


def _make_tiled_kernel(approximate_gelu):
    """grid = (row_tiles, n_tiles): Linear+GELU cached in scratch, reused per N tile."""
    def kernel(x_ref, w1_ref, b1_ref, w2_ref, b2_ref, o_ref, h_ref):
        j = pl.program_id(1)

        @pl.when(j == 0)
        def _():
            h = jnp.dot(x_ref[...], w1_ref[...],
                        preferred_element_type=jnp.float32)
            h = _gelu(h + b1_ref[...].astype(jnp.float32), approximate_gelu)
            h_ref[...] = h.astype(h_ref.dtype)

        o = jnp.dot(h_ref[...], w2_ref[...], preferred_element_type=jnp.float32)
        o_ref[...] = (o + b2_ref[...].astype(jnp.float32)).astype(o_ref.dtype)
    return kernel


# ----------------------------------------------------------------------------
# Generation-aware policy
# ----------------------------------------------------------------------------
def _tpu_params():
    """Return (vmem_physical_bytes, scoped_vmem_default_bytes, num_tensorcores)."""
    kind = ""
    try:
        kind = jax.devices()[0].device_kind.lower()
    except Exception:
        pass
    if "v5 lite" in kind or "v5lite" in kind or "v5e" in kind:
        return 128 << 20, 16 << 20, 1          # v5e: 16 MiB scoped default!
    if "v5" in kind:
        return 128 << 20, 16 << 20, 1          # v5p: treat conservatively
    if "v6" in kind:
        return 128 << 20, 32 << 20, 1          # v6e
    if "v7" in kind or "7x" in kind:
        return 64 << 20, 32 << 20, 2           # v7x: 2 TCs, 64 MiB VMEM
    return 64 << 20, 16 << 20, 1               # unknown: conservative


def _round_up(a, b):
    return ((a + b - 1) // b) * b


def _min_pad_tile(m, candidates):
    """Pick the candidate row tile minimizing tail padding (ties -> larger tile)."""
    best_tm, best_pad = None, None
    for t in candidates:
        if t > m:
            continue
        pad = pl.cdiv(m, t) * t - m
        if best_pad is None or pad < best_pad:
            best_tm, best_pad = t, pad
    return best_tm if best_tm is not None else m


def _select_tm(M, Dv, H, num_tc, vmem_phys):
    cands = (512, 448, 384, 320, 288, 256, 224, 192, 160, 128)  # multiples of 8
    if num_tc >= 2:
        # v7x: keep >= 2 row tiles so both TensorCores get work.
        if M <= 16:
            return M
        if M <= 1024:
            return _round_up(pl.cdiv(M, 2), 8)
        return _min_pad_tile(M, cands)
    # Single TensorCore (v5e/v6e): one whole-M tile while activations stay small.
    per_row = (2 * Dv + 3 * H) * 4              # x/out double-buffered + h, f32 bound
    if M <= 2048 and M * per_row <= vmem_phys // 4:
        return M
    return _min_pad_tile(M, cands)


# ----------------------------------------------------------------------------
# Wrapper
# ----------------------------------------------------------------------------
def connector_forward(x, w1, b1, w2, b2, *, tm=None, tn=None,
                      approximate_gelu=False):
    """x: (B, S, Dv) -> (B, S, H).  Fused Linear -> GELU -> Linear.

    Weights are stored (in_features, out_features), i.e. the transpose of
    PyTorch's nn.Linear.weight (transpose once at parameter-setup time).
    The GELU output is carried in w2.dtype between the two matmuls.
    """
    B, S, Dv = x.shape
    H = w1.shape[1]
    M = B * S

    x2 = x.reshape(M, Dv)
    b1_2 = b1.reshape(1, H)
    b2_2 = b2.reshape(1, H)

    vmem_phys, vmem_default, num_tc = _tpu_params()

    xsize = jnp.dtype(x.dtype).itemsize
    wsize = jnp.dtype(w1.dtype).itemsize
    bsize = jnp.dtype(b1.dtype).itemsize
    osize = xsize
    compute_dtype = w2.dtype
    csize = jnp.dtype(compute_dtype).itemsize

    # ---- tile selection ------------------------------------------------------
    if tm is None:
        tm = _select_tm(M, Dv, H, num_tc, vmem_phys)
    tm = max(1, min(tm, M))

    # Fully-resident estimate (single N tile, single-buffered weights).
    fused_est = ((Dv * H + H * H) * wsize + 2 * H * bsize
                 + 2 * tm * Dv * xsize + 2 * tm * H * osize)
    if tn is None:
        tn = H if fused_est <= int(0.70 * vmem_phys) else min(512, H)
    tn = max(1, min(tn, H))
    gm, gn = pl.cdiv(M, tm), pl.cdiv(H, tn)
    fused = gn == 1

    # ---- VMEM limit, kept in sync with actual buffer counts -------------------
    if fused:
        est = fused_est
    else:
        est = (Dv * H * wsize + H * bsize                 # W1/b1 single-buffered
               + 2 * (H * tn * wsize + tn * bsize)        # W2/b2 double-buffered
               + 2 * tm * Dv * xsize + 2 * tm * tn * osize
               + tm * H * csize)                          # h scratch
    want = int(1.35 * est)
    vmem_limit = (min(_round_up(want, 1 << 20), int(0.90 * vmem_phys))
                  if want > vmem_default else None)

    # ---- advisory cost estimate ----------------------------------------------
    w2_passes = 1 if fused else gm
    cost = pl.CostEstimate(
        flops=2 * M * H * (Dv + H),
        transcendentals=M * H,
        bytes_accessed=(M * Dv * xsize + M * H * osize
                        + (Dv * H + w2_passes * H * H) * wsize
                        + 2 * H * bsize))

    out_shape = jax.ShapeDtypeStruct((M, H), x.dtype)

    def _build(single_buffer_weights):
        def wspec(shape, imap):
            if single_buffer_weights:
                return pl.BlockSpec(shape, imap, pipeline_mode=pl.Buffered(1))
            return pl.BlockSpec(shape, imap)

        if fused:
            kernel = _make_fused_kernel(approximate_gelu)
            grid = (gm,)
            in_specs = [
                pl.BlockSpec((tm, Dv), lambda i: (i, 0)),   # x row tile
                wspec((Dv, H), lambda i: (0, 0)),           # W1 (resident)
                wspec((1, H), lambda i: (0, 0)),            # b1 (resident)
                wspec((H, H), lambda i: (0, 0)),            # W2 (resident)
                wspec((1, H), lambda i: (0, 0)),            # b2 (resident)
            ]
            out_specs = pl.BlockSpec((tm, H), lambda i: (i, 0))
            scratch = []
            sem = ("parallel",)
        else:
            kernel = _make_tiled_kernel(approximate_gelu)
            grid = (gm, gn)
            in_specs = [
                pl.BlockSpec((tm, Dv), lambda i, j: (i, 0)),  # x row tile
                wspec((Dv, H), lambda i, j: (0, 0)),          # W1 (resident)
                wspec((1, H), lambda i, j: (0, 0)),           # b1 (resident)
                pl.BlockSpec((H, tn), lambda i, j: (0, j)),   # W2 N tile
                pl.BlockSpec((1, tn), lambda i, j: (0, j)),   # b2 N tile
            ]
            out_specs = pl.BlockSpec((tm, tn), lambda i, j: (i, j))
            scratch = [pltpu.VMEM((tm, H), compute_dtype)]
            sem = ("parallel", "arbitrary")
        return kernel, grid, in_specs, out_specs, scratch, sem

    def _run(single_buffer_weights):
        kernel, grid, in_specs, out_specs, scratch, sem = _build(single_buffer_weights)
        return pl.pallas_call(
            kernel,
            out_shape=out_shape,
            grid_spec=pltpu.PrefetchScalarGridSpec(
                num_scalar_prefetch=0, grid=grid,
                in_specs=in_specs, out_specs=out_specs,
                scratch_shapes=scratch),
            compiler_params=pltpu.CompilerParams(
                dimension_semantics=sem, vmem_limit_bytes=vmem_limit),
            cost_estimate=cost,
        )(x2, w1, b1_2, w2, b2_2)

    try:
        out2 = _run(True)    # single-buffered resident weights (pl.Buffered(1))
    except Exception:
        # TODO(synk): drop this fallback once pl.Buffered(1) on constant-index
        # weight specs is guaranteed available on all deployed jax builds.
        out2 = _run(False)   # default double-buffered weights

    return out2.reshape(B, S, H)


def connector_reference(x, w1, b1, w2, b2):
    h = jnp.dot(x, w1) + b1
    h = 0.5 * h * (1.0 + lax.erf(h * _SQRT_HALF))
    return jnp.dot(h, w2) + b2


if __name__ == "__main__":
    # Small config consistent with the module: vision_hidden_size=32, hidden_size=32.
    B, S, Dv, H = 2, 8, 32, 32

    key = jax.random.PRNGKey(0)
    kx, kw1, kb1, kw2, kb2 = jax.random.split(key, 5)

    x = jax.random.normal(kx, (B, S, Dv), dtype=jnp.float32)
    # Linear weights already transposed to (in_features, out_features).
    w1 = jax.random.normal(kw1, (Dv, H), dtype=jnp.float32) * 0.02
    b1 = jax.random.normal(kb1, (H,), dtype=jnp.float32) * 0.02
    w2 = jax.random.normal(kw2, (H, H), dtype=jnp.float32) * 0.02
    b2 = jax.random.normal(kb2, (H,), dtype=jnp.float32) * 0.02

    # f32 path (fused kernel): tight check against the pure-JAX reference.
    out = jax.block_until_ready(connector_forward(x, w1, b1, w2, b2))
    ref = connector_reference(x, w1, b1, w2, b2)
    assert out.shape == (B, S, H)
    assert jnp.allclose(out, ref, atol=1e-5, rtol=1e-5)

    # bf16 deployment path: bf16 MXU operands, f32 accumulation.
    xb, w1b, b1b, w2b, b2b = (a.astype(jnp.bfloat16) for a in (x, w1, b1, w2, b2))
    out_bf = jax.block_until_ready(connector_forward(xb, w1b, b1b, w2b, b2b))
    ref_bf = connector_reference(
        *(a.astype(jnp.float32) for a in (xb, w1b, b1b, w2b, b2b)))
    assert out_bf.shape == (B, S, H) and out_bf.dtype == jnp.bfloat16
    assert jnp.allclose(out_bf.astype(jnp.float32), ref_bf, atol=2e-3, rtol=2e-2)

    # Exercise the N-tiled (scratch) path with a slightly larger hidden size.
    Dv2, H2 = 128, 256
    k2 = jax.random.split(key, 6)
    x3 = jax.random.normal(k2[0], (B, S, Dv2), dtype=jnp.float32)
    w1c = jax.random.normal(k2[1], (Dv2, H2), dtype=jnp.float32) * 0.02
    b1c = jax.random.normal(k2[2], (H2,), dtype=jnp.float32) * 0.02
    w2c = jax.random.normal(k2[3], (H2, H2), dtype=jnp.float32) * 0.02
    b2c = jax.random.normal(k2[4], (H2,), dtype=jnp.float32) * 0.02
    out3 = jax.block_until_ready(
        connector_forward(x3, w1c, b1c, w2c, b2c, tn=128))   # forces grid[1] = 2
    ref3 = connector_reference(x3, w1c, b1c, w2c, b2c)
    assert out3.shape == (B, S, H2)
    assert jnp.allclose(out3, ref3, atol=1e-4, rtol=1e-4)

    print("KERNEL_OK")
</pallas_src>

<mosaic_0001>
module attributes {stable_mosaic.version = 11 : i64} {
  func.func @kernel(%arg0: i32, %arg1: memref<16x32xf32, #tpu.memory_space<vmem>>, %arg2: memref<32x32xf32, #tpu.memory_space<vmem>>, %arg3: memref<1x32xf32, #tpu.memory_space<vmem>>, %arg4: memref<32x32xf32, #tpu.memory_space<vmem>>, %arg5: memref<1x32xf32, #tpu.memory_space<vmem>>, %arg6: memref<16x32xf32, #tpu.memory_space<vmem>>) attributes {dimension_semantics = [#tpu.dimension_semantics<parallel>], iteration_bounds = array<i64: 1>, scalar_prefetch = 0 : i64, scratch_operands = 0 : i64, tpu.core_type = #tpu.core_type<tc>, window_params = [{transform_indices = @transform_0, window_bounds = array<i64: 16, 32>}, {pipeline_mode = #tpu.pipeline_mode<synchronous>, transform_indices = @transform_1, window_bounds = array<i64: 32, 32>}, {pipeline_mode = #tpu.pipeline_mode<synchronous>, transform_indices = @transform_2, window_bounds = array<i64: 1, 32>}, {pipeline_mode = #tpu.pipeline_mode<synchronous>, transform_indices = @transform_3, window_bounds = array<i64: 32, 32>}, {pipeline_mode = #tpu.pipeline_mode<synchronous>, transform_indices = @transform_4, window_bounds = array<i64: 1, 32>}, {transform_indices = @transform_5, window_bounds = array<i64: 16, 32>}]} {
    %c0 = arith.constant 0 : index
    %c0_0 = arith.constant 0 : index
    %0 = vector.load %arg1[%c0, %c0_0] : memref<16x32xf32, #tpu.memory_space<vmem>>, vector<16x32xf32>
    %c0_1 = arith.constant 0 : index
    %c0_2 = arith.constant 0 : index
    %1 = vector.load %arg2[%c0_1, %c0_2] : memref<32x32xf32, #tpu.memory_space<vmem>>, vector<32x32xf32>
    %cst = arith.constant dense<0.000000e+00> : vector<16x32xf32>
    %2 = tpu.matmul %0, %1, %cst {dimension_numbers = #tpu.dot_dimension_numbers<[1], [0], [0], [1], [0, 0, 1, 1], [], []>} : vector<16x32xf32>, vector<32x32xf32>, vector<16x32xf32> -> vector<16x32xf32>
    %c0_3 = arith.constant 0 : index
    %c0_4 = arith.constant 0 : index
    %3 = vector.load %arg3[%c0_3, %c0_4] : memref<1x32xf32, #tpu.memory_space<vmem>>, vector<1x32xf32>
    %4 = vector.broadcast %3 : vector<1x32xf32> to vector<16x32xf32>
    %5 = arith.addf %2, %4 : vector<16x32xf32>
    %cst_5 = arith.constant 5.000000e-01 : f32
    %6 = vector.broadcast %cst_5 : f32 to vector<16x32xf32>
    %7 = arith.mulf %6, %5 : vector<16x32xf32>
    %cst_6 = arith.constant 0.707106769 : f32
    %8 = vector.broadcast %cst_6 : f32 to vector<16x32xf32>
    %9 = arith.mulf %5, %8 : vector<16x32xf32>
    %10 = math.erf %9 : vector<16x32xf32>
    %cst_7 = arith.constant 1.000000e+00 : f32
    %11 = vector.broadcast %cst_7 : f32 to vector<16x32xf32>
    %12 = arith.addf %11, %10 : vector<16x32xf32>
    %13 = arith.mulf %7, %12 : vector<16x32xf32>
    %c0_8 = arith.constant 0 : index
    %c0_9 = arith.constant 0 : index
    %14 = vector.load %arg4[%c0_8, %c0_9] : memref<32x32xf32, #tpu.memory_space<vmem>>, vector<32x32xf32>
    %cst_10 = arith.constant dense<0.000000e+00> : vector<16x32xf32>
    %15 = tpu.matmul %13, %14, %cst_10 {dimension_numbers = #tpu.dot_dimension_numbers<[1], [0], [0], [1], [0, 0, 1, 1], [], []>} : vector<16x32xf32>, vector<32x32xf32>, vector<16x32xf32> -> vector<16x32xf32>
    %c0_11 = arith.constant 0 : index
    %c0_12 = arith.constant 0 : index
    %16 = vector.load %arg5[%c0_11, %c0_12] : memref<1x32xf32, #tpu.memory_space<vmem>>, vector<1x32xf32>
    %17 = vector.broadcast %16 : vector<1x32xf32> to vector<16x32xf32>
    %18 = arith.addf %15, %17 : vector<16x32xf32>
    %c0_13 = arith.constant 0 : index
    %c0_14 = arith.constant 0 : index
    %19 = vector.load %arg6[%c0_13, %c0_14] : memref<16x32xf32, #tpu.memory_space<vmem>>, vector<16x32xf32>
    tpu.vector_store %arg6[%c0_13, %c0_14], %18 {strides = array<i32>} : memref<16x32xf32, #tpu.memory_space<vmem>>, vector<16x32xf32>,
    return
  }
  func.func @transform_0(%arg0: i32) -> (i32, i32) {
    %c0_i32 = arith.constant 0 : i32
    %c0_i32_0 = arith.constant 0 : i32
    return %arg0, %c0_i32 : i32, i32
  }
  func.func @transform_1(%arg0: i32) -> (i32, i32) {
    %c0_i32 = arith.constant 0 : i32
    %c0_i32_0 = arith.constant 0 : i32
    %c0_i32_1 = arith.constant 0 : i32
    return %c0_i32, %c0_i32_0 : i32, i32
  }
  func.func @transform_2(%arg0: i32) -> (i32, i32) {
    %c0_i32 = arith.constant 0 : i32
    %c0_i32_0 = arith.constant 0 : i32
    %c0_i32_1 = arith.constant 0 : i32
    return %c0_i32, %c0_i32_0 : i32, i32
  }
  func.func @transform_3(%arg0: i32) -> (i32, i32) {
    %c0_i32 = arith.constant 0 : i32
    %c0_i32_0 = arith.constant 0 : i32
    %c0_i32_1 = arith.constant 0 : i32
    return %c0_i32, %c0_i32_0 : i32, i32
  }
  func.func @transform_4(%arg0: i32) -> (i32, i32) {
    %c0_i32 = arith.constant 0 : i32
    %c0_i32_0 = arith.constant 0 : i32
    %c0_i32_1 = arith.constant 0 : i32
    return %c0_i32, %c0_i32_0 : i32, i32
  }
  func.func @transform_5(%arg0: i32) -> (i32, i32) {
    %c0_i32 = arith.constant 0 : i32
    %c0_i32_0 = arith.constant 0 : i32
    return %arg0, %c0_i32 : i32, i32
  }
}

module attributes {stable_mosaic.version = 11 : i64} {
  func.func @kernel(%arg0: i32, %arg1: memref<16x32xf32, #tpu.memory_space<vmem>>, %arg2: memref<32x32xf32, #tpu.memory_space<vmem>>, %arg3: memref<1x32xf32, #tpu.memory_space<vmem>>, %arg4: memref<32x32xf32, #tpu.memory_space<vmem>>, %arg5: memref<1x32xf32, #tpu.memory_space<vmem>>, %arg6: memref<16x32xf32, #tpu.memory_space<vmem>>) attributes {dimension_semantics = [#tpu.dimension_semantics<parallel>], iteration_bounds = array<i64: 1>, scalar_prefetch = 0 : i64, scratch_operands = 0 : i64, tpu.core_type = #tpu.core_type<tc>, window_params = [{transform_indices = @transform_0, window_bounds = array<i64: 16, 32>}, {pipeline_mode = #tpu.pipeline_mode<synchronous>, transform_indices = @transform_1, window_bounds = array<i64: 32, 32>}, {pipeline_mode = #tpu.pipeline_mode<synchronous>, transform_indices = @transform_2, window_bounds = array<i64: 1, 32>}, {pipeline_mode = #tpu.pipeline_mode<synchronous>, transform_indices = @transform_3, window_bounds = array<i64: 32, 32>}, {pipeline_mode = #tpu.pipeline_mode<synchronous>, transform_indices = @transform_4, window_bounds = array<i64: 1, 32>}, {transform_indices = @transform_5, window_bounds = array<i64: 16, 32>}]} {
    %c0 = arith.constant 0 : index
    %c0_0 = arith.constant 0 : index
    %0 = vector.load %arg1[%c0, %c0_0] : memref<16x32xf32, #tpu.memory_space<vmem>>, vector<16x32xf32>
    %c0_1 = arith.constant 0 : index
    %c0_2 = arith.constant 0 : index
    %1 = vector.load %arg2[%c0_1, %c0_2] : memref<32x32xf32, #tpu.memory_space<vmem>>, vector<32x32xf32>
    %cst = arith.constant dense<0.000000e+00> : vector<16x32xf32>
    %2 = tpu.matmul %0, %1, %cst {dimension_numbers = #tpu.dot_dimension_numbers<[1], [0], [0], [1], [0, 0, 1, 1], [], []>} : vector<16x32xf32>, vector<32x32xf32>, vector<16x32xf32> -> vector<16x32xf32>
    %c0_3 = arith.constant 0 : index
    %c0_4 = arith.constant 0 : index
    %3 = vector.load %arg3[%c0_3, %c0_4] : memref<1x32xf32, #tpu.memory_space<vmem>>, vector<1x32xf32>
    %4 = vector.broadcast %3 : vector<1x32xf32> to vector<16x32xf32>
    %5 = arith.addf %2, %4 : vector<16x32xf32>
    %cst_5 = arith.constant 5.000000e-01 : f32
    %6 = vector.broadcast %cst_5 : f32 to vector<16x32xf32>
    %7 = arith.mulf %6, %5 : vector<16x32xf32>
    %cst_6 = arith.constant 0.707106769 : f32
    %8 = vector.broadcast %cst_6 : f32 to vector<16x32xf32>
    %9 = arith.mulf %5, %8 : vector<16x32xf32>
    %10 = math.erf %9 : vector<16x32xf32>
    %cst_7 = arith.constant 1.000000e+00 : f32
    %11 = vector.broadcast %cst_7 : f32 to vector<16x32xf32>
    %12 = arith.addf %11, %10 : vector<16x32xf32>
    %13 = arith.mulf %7, %12 : vector<16x32xf32>
    %c0_8 = arith.constant 0 : index
    %c0_9 = arith.constant 0 : index
    %14 = vector.load %arg4[%c0_8, %c0_9] : memref<32x32xf32, #tpu.memory_space<vmem>>, vector<32x32xf32>
    %cst_10 = arith.constant dense<0.000000e+00> : vector<16x32xf32>
    %15 = tpu.matmul %13, %14, %cst_10 {dimension_numbers = #tpu.dot_dimension_numbers<[1], [0], [0], [1], [0, 0, 1, 1], [], []>} : vector<16x32xf32>, vector<32x32xf32>, vector<16x32xf32> -> vector<16x32xf32>
    %c0_11 = arith.constant 0 : index
    %c0_12 = arith.constant 0 : index
    %16 = vector.load %arg5[%c0_11, %c0_12] : memref<1x32xf32, #tpu.memory_space<vmem>>, vector<1x32xf32>
    %17 = vector.broadcast %16 : vector<1x32xf32> to vector<16x32xf32>
    %18 = arith.addf %15, %17 : vector<16x32xf32>
    %c0_13 = arith.constant 0 : index
    %c0_14 = arith.constant 0 : index
    %19 = vector.load %arg6[%c0_13, %c0_14] : memref<16x32xf32, #tpu.memory_space<vmem>>, vector<16x32xf32>
    tpu.vector_store %arg6[%c0_13, %c0_14], %18 {strides = array<i32>} : memref<16x32xf32, #tpu.memory_space<vmem>>, vector<16x32xf32>,
    return
  }
  func.func @transform_0(%arg0: i32) -> (i32, i32) {
    %c0_i32 = arith.constant 0 : i32
    %c0_i32_0 = arith.constant 0 : i32
    return %arg0, %c0_i32 : i32, i32
  }
  func.func @transform_1(%arg0: i32) -> (i32, i32) {
    %c0_i32 = arith.constant 0 : i32
    %c0_i32_0 = arith.constant 0 : i32
    %c0_i32_1 = arith.constant 0 : i32
    return %c0_i32, %c0_i32_0 : i32, i32
  }
  func.func @transform_2(%arg0: i32) -> (i32, i32) {
    %c0_i32 = arith.constant 0 : i32
    %c0_i32_0 = arith.constant 0 : i32
    %c0_i32_1 = arith.constant 0 : i32
    return %c0_i32, %c0_i32_0 : i32, i32
  }
  func.func @transform_3(%arg0: i32) -> (i32, i32) {
    %c0_i32 = arith.constant 0 : i32
    %c0_i32_0 = arith.constant 0 : i32
    %c0_i32_1 = arith.constant 0 : i32
    return %c0_i32, %c0_i32_0 : i32, i32
  }
  func.func @transform_4(%arg0: i32) -> (i32, i32) {
    %c0_i32 = arith.constant 0 : i32
    %c0_i32_0 = arith.constant 0 : i32
    %c0_i32_1 = arith.constant 0 : i32
    return %c0_i32, %c0_i32_0 : i32, i32
  }
  func.func @transform_5(%arg0: i32) -> (i32, i32) {
    %c0_i32 = arith.constant 0 : i32
    %c0_i32_0 = arith.constant 0 : i32
    return %arg0, %c0_i32 : i32, i32
  }
}

</mosaic_0001>

<llo_original>
// kernel: tpu_custom_call.1
$region0: #{tpu_custom_call.1}
  #allocation0 [shape = 'u32[]', space=smem, size = 0x4, offset = 0x4, fixed_abs, tag = 'smem constant byte address 0x4 - core index']
  #allocation1 [shape = 'u32[144,128]{1,0:T(1,128)}', space=vmem, size = 0x12000, scoped, tag = 'internal scratch']
  %s0 = inlined_call_operand.hbm [shape: f32[16,32], index: 0, kind: input, shape index: {}]
  %s1 = inlined_call_operand.hbm [shape: f32[32,32], index: 1, kind: input, shape index: {}]
  %s2 = inlined_call_operand.vmem [shape: f32[1,32], index: 2, kind: input, shape index: {}]
  %s3 = inlined_call_operand.hbm [shape: f32[32,32], index: 3, kind: input, shape index: {}]
  %s4 = inlined_call_operand.vmem [shape: f32[1,32], index: 4, kind: input, shape index: {}]
  %s5 = inlined_call_operand.hbm [shape: f32[16,32], index: 5, kind: output, shape index: {}]
  %s6 = sld [smem:[#allocation0]]
  $region42: #{tpu_custom_call.1} parent=0
    _
  %s8 = ssub.s32 1, %s6
  %s9 = scalar_select 0, %s8, %s6
  $region1: #{tpu_custom_call.1} parent=0
    #allocation2 [shape = 'u8[8192]{0}', space=vmem, size = 0x2000, scoped, tag = 'input window, operand 0, single buffered']
    #allocation3 [shape = 's32[1]{0}', space=sflag, size = 0x4, scoped, tag = 'scoped memory for tpu_custom_call.1']
    #allocation4 [shape = 's32[1]{0}', space=sflag, size = 0x4, scoped, tag = 'scoped memory for tpu_custom_call.1']
    #allocation5 [shape = 'u8[16384]{0}', space=vmem, size = 0x4000, scoped, tag = 'input window, operand 1, single buffered']
    #allocation6 [shape = 's32[1]{0}', space=sflag, size = 0x4, scoped, tag = 'scoped memory for tpu_custom_call.1']
    #allocation7 [shape = 'u8[16384]{0}', space=vmem, size = 0x4000, scoped, tag = 'input window, operand 3, single buffered']
    #allocation8 [shape = 'u8[8192]{0}', space=vmem, size = 0x2000, scoped, tag = 'output window, operand 0, single buffered']
    %10 = vsyncpa [#allocation3], 0
    %11 = vsyncpa [#allocation6], 0
    %12 = vsyncpa [#allocation4], 0
    // Predicated region
    $region2: #{tpu_custom_call.1} parent=1 // pred_check
      _
    $region3: #{tpu_custom_call.1} parent=1 // pred_check_branch
      %14 = sbr.rel (0) target = $region5
    $region4: #{tpu_custom_call.1} parent=1 // pred_region
      %s16 = ssub.s32 256, 256
      %17 = vsyncadd [#allocation3], %s16
      %s18 = sshll.u32 [#allocation2], 4
      %s19 = int_to_ptr.vmem [resolvable:$true] %s18
      %24 = dma.hbm_to_vmem [thread:$0]  %s0, 256, %s19, [#allocation3], 128, 128, 8
    $region5: #{tpu_custom_call.1} parent=1 // pred_fallthru
      _
    // Predicated region
    $region6: #{tpu_custom_call.1} parent=1 // pred_check
      _
    $region7: #{tpu_custom_call.1} parent=1 // pred_check_branch
      %26 = sbr.rel (0) target = $region9
    $region8: #{tpu_custom_call.1} parent=1 // pred_region
      %s28 = ssub.s32 512, 512
      %29 = vsyncadd [#allocation6], %s28
      %s30 = sshll.u32 [#allocation5], 4
      %s31 = int_to_ptr.vmem [resolvable:$true] %s30
      %36 = dma.hbm_to_vmem [thread:$0]  %s1, 512, %s31, [#allocation6], 128, 128, 8
    $region9: #{tpu_custom_call.1} parent=1 // pred_fallthru
      _
    // Predicated region
    $region10: #{tpu_custom_call.1} parent=1 // pred_check
      _
    $region11: #{tpu_custom_call.1} parent=1 // pred_check_branch
      %38 = sbr.rel (0) target = $region13
    $region12: #{tpu_custom_call.1} parent=1 // pred_region
      _
    $region13: #{tpu_custom_call.1} parent=1 // pred_fallthru
      _
    // Predicated region
    $region14: #{tpu_custom_call.1} parent=1 // pred_check
      _
    $region15: #{tpu_custom_call.1} parent=1 // pred_check_branch
      %40 = sbr.rel (0) target = $region17
    $region16: #{tpu_custom_call.1} parent=1 // pred_region
      %s42 = ssub.s32 512, 512
      %43 = vsyncadd [#allocation6], %s42
      %s44 = sshll.u32 [#allocation7], 4
      %s45 = int_to_ptr.vmem [resolvable:$true] %s44
      %50 = dma.hbm_to_vmem [thread:$0]  %s3, 512, %s45, [#allocation6], 128, 128, 8
    $region17: #{tpu_custom_call.1} parent=1 // pred_fallthru
      _
    // Predicated region
    $region18: #{tpu_custom_call.1} parent=1 // pred_check
      _
    $region19: #{tpu_custom_call.1} parent=1 // pred_check_branch
      %52 = sbr.rel (0) target = $region21
    $region20: #{tpu_custom_call.1} parent=1 // pred_region
      _
    $region21: #{tpu_custom_call.1} parent=1 // pred_fallthru
      _
    // Predicated region
    $region22: #{tpu_custom_call.1} parent=1 // pred_check
      _
    $region23: #{tpu_custom_call.1} parent=1 // pred_check_branch
      %54 = sbr.rel (0) target = $region25
    $region24: #{tpu_custom_call.1} parent=1 // pred_region
      %55 = dma.done [#allocation3], 256
    $region25: #{tpu_custom_call.1} parent=1 // pred_fallthru
      _
    // Predicated region
    $region26: #{tpu_custom_call.1} parent=1 // pred_check
      _
    $region27: #{tpu_custom_call.1} parent=1 // pred_check_branch
      %57 = sbr.rel (0) target = $region29
    $region28: #{tpu_custom_call.1} parent=1 // pred_region
      %58 = dma.done [#allocation6], 512
    $region29: #{tpu_custom_call.1} parent=1 // pred_fallthru
      _
    // Predicated region
    $region30: #{tpu_custom_call.1} parent=1 // pred_check
      _
    $region31: #{tpu_custom_call.1} parent=1 // pred_check_branch
      %60 = sbr.rel (0) target = $region33
    $region32: #{tpu_custom_call.1} parent=1 // pred_region
      %61 = dma.done [#allocation6], 512
    $region33: #{tpu_custom_call.1} parent=1 // pred_fallthru
      _
    %v62 = vld [vmem:[#allocation2] sm:$0xff]
    %v63 = vld [vmem:[#allocation2 + $0x8] sm:$0xff]
    %v64 = vld [vmem:[#allocation5] sm:$0xff]
    %v65 = vld [vmem:[#allocation5 + $0x8] sm:$0xff]
    %v66 = vld [vmem:[#allocation5 + $0x10] sm:$0xff]
    %v67 = vld [vmem:[#allocation5 + $0x18] sm:$0xff]
    %v68 = vld [vmem:[%s2] sm:$0x1]
    %v70 = vlaneseq
    %v71 = vshrl.u32 %v70, 7
    %v72 = vsub.s32 0, %v71
    %v73 = vrot.slane %v68, %v72
    %vm75 = vcmask 261120
    %v77 = vsel %vm75, %v62, 0
    %v80 = vsel %vm75, %v63, 0
    %82 = vmatprep.subr.mxu0 0.0
    %83 = vmatpush1.msra.mxu0 %v64
    %84 = vmatprep.subr.mxu0 0.0
    %85 = vmatpush1.msra.mxu0 %v65
    %86 = vmatprep.subr.mxu0 0.0
    %87 = vmatpush1.msra.mxu0 %v66
    %88 = vmatprep.subr.mxu0 0.0
    %89 = vmatpush1.msra.mxu0 %v67
    %90 = vmatprep.subr.mxu0 0.0
    %91 = vmatpush1.msra.mxu0 0.0
    %92 = vmatprep.subr.mxu0 0.0
    %93 = vmatpush1.msra.mxu0 0.0
    %94 = vmatprep.subr.mxu0 0.0
    %95 = vmatpush1.msra.mxu0 0.0
    %96 = vmatprep.subr.mxu0 0.0
    %97 = vmatpush1.msra.mxu0 0.0
    %98 = vmatprep.subr.mxu0 0.0
    %99 = vmatpush1.msra.mxu0 0.0
    %100 = vmatprep.subr.mxu0 0.0
    %101 = vmatpush1.msra.mxu0 0.0
    %102 = vmatprep.subr.mxu0 0.0
    %103 = vmatpush1.msra.mxu0 0.0
    %104 = vmatprep.subr.mxu0 0.0
    %105 = vmatpush1.msra.mxu0 0.0
    %106 = vmatprep.subr.mxu0 0.0
    %107 = vmatpush1.msra.mxu0 0.0
    %108 = vmatprep.subr.mxu0 0.0
    %109 = vmatpush1.msra.mxu0 0.0
    %110 = vmatprep.subr.mxu0 0.0
    %111 = vmatpush1.msra.mxu0 0.0
    %112 = vmatprep.subr.mxu0 0.0
    %113 = vmatpush1.msra.mxu0 0.0
    %114 = vmatprep.subr.mxu0 0.0
    %115 = vmatpush1.msra.mxu0 0.0
    %116 = vmatprep.subr.mxu0 0.0
    %117 = vmatpush1.msra.mxu0 0.0
    %118 = vmatprep.subr.mxu0 0.0
    %119 = vmatpush1.msra.mxu0 0.0
    %120 = vmatprep.subr.mxu0 0.0
    %121 = vmatpush1.msra.mxu0 0.0
    %122 = vmatprep.subr.mxu0 0.0
    %123 = vmatpush1.msra.mxu0 0.0
    %124 = vmatprep.subr.mxu0 0.0
    %125 = vmatpush1.msra.mxu0 0.0
    %126 = vmatprep.subr.mxu0 0.0
    %127 = vmatpush1.msra.mxu0 0.0
    %128 = vmatprep.subr.mxu0 0.0
    %129 = vmatpush1.msra.mxu0 0.0
    %130 = vmatprep.subr.mxu0 0.0
    %131 = vmatpush1.msra.mxu0 0.0
    %132 = vmatprep.subr.mxu0 0.0
    %133 = vmatpush1.msra.mxu0 0.0
    %134 = vmatprep.subr.mxu0 0.0
    %135 = vmatpush1.msra.mxu0 0.0
    %136 = vmatprep.subr.mxu0 0.0
    %137 = vmatpush1.msra.mxu0 0.0
    %138 = vmatprep.subr.mxu0 0.0
    %139 = vmatpush1.msra.mxu0 0.0
    %140 = vmatprep.subr.mxu0 0.0
    %141 = vmatpush1.msra.mxu0 0.0
    %142 = vmatprep.subr.mxu0 0.0
    %143 = vmatpush1.msra.mxu0 0.0
    %144 = vmatprep.subr.mxu0 0.0
    %145 = vmatpush1.msra.mxu0 0.0
    %146 = vmatprep.mubr.f32.mxu0 0.0
    %147 = vmatmul.mubr.f32.gmra.mrb[0].mxu0 %v77
    %v148 = vpop.f32.mrb[0].mxu0
    %v149 = vadd.f32 %v73, %v148
    %v150 = vpop.f32.mrb[0].mxu0
    %151 = vmatprep.mubr.f32.mxu0 0.0
    %152 = vmatmul.mubr.f32.gmra.mrb[0].mxu0 %v80
    %v153 = vpop.f32.mrb[0].mxu0
    %v154 = vadd.f32 %v73, %v153
    %v155 = vpop.f32.mrb[0].mxu0
    %156 = vdwg.mxu0
    %v157 = vmul.f32 %v149, 0.5
    %v158 = vmul.f32 %v154, 0.5
    %v159 = vmul.f32 %v149, 0.70710677
    %v160 = vmul.f32 %v154, 0.70710677
    %v161 = verf.f32.pop %v159
    %v162 = verf.f32.pop %v160
    %v163 = vadd.f32 %v161, 1.0
    %v164 = vadd.f32 %v162, 1.0
    %v165 = vmul.f32 %v157, %v163
    %v166 = vmul.f32 %v158, %v164
    %v167 = vld [vmem:[#allocation7] sm:$0xff]
    %v168 = vld [vmem:[#allocation7 + $0x8] sm:$0xff]
    %v169 = vld [vmem:[#allocation7 + $0x10] sm:$0xff]
    %v170 = vld [vmem:[#allocation7 + $0x18] sm:$0xff]
    %v171 = vld [vmem:[%s4] sm:$0x1]
    %v173 = vlaneseq
    %v174 = vshrl.u32 %v173, 7
    %v175 = vsub.s32 0, %v174
    %v176 = vrot.slane %v171, %v175
    %v179 = vsel %vm75, %v165, 0
    %v182 = vsel %vm75, %v166, 0
    %184 = vmatprep.subr.mxu0 0.0
    %185 = vmatpush1.msra.mxu0 %v167
    %186 = vmatprep.subr.mxu0 0.0
    %187 = vmatpush1.msra.mxu0 %v168
    %188 = vmatprep.subr.mxu0 0.0
    %189 = vmatpush1.msra.mxu0 %v169
    %190 = vmatprep.subr.mxu0 0.0
    %191 = vmatpush1.msra.mxu0 %v170
    %192 = vmatprep.subr.mxu0 0.0
    %193 = vmatpush1.msra.mxu0 0.0
    %194 = vmatprep.subr.mxu0 0.0
    %195 = vmatpush1.msra.mxu0 0.0
    %196 = vmatprep.subr.mxu0 0.0
    %197 = vmatpush1.msra.mxu0 0.0
    %198 = vmatprep.subr.mxu0 0.0
    %199 = vmatpush1.msra.mxu0 0.0
    %200 = vmatprep.subr.mxu0 0.0
    %201 = vmatpush1.msra.mxu0 0.0
    %202 = vmatprep.subr.mxu0 0.0
    %203 = vmatpush1.msra.mxu0 0.0
    %204 = vmatprep.subr.mxu0 0.0
    %205 = vmatpush1.msra.mxu0 0.0
    %206 = vmatprep.subr.mxu0 0.0
    %207 = vmatpush1.msra.mxu0 0.0
    %208 = vmatprep.subr.mxu0 0.0
    %209 = vmatpush1.msra.mxu0 0.0
    %210 = vmatprep.subr.mxu0 0.0
    %211 = vmatpush1.msra.mxu0 0.0
    %212 = vmatprep.subr.mxu0 0.0
    %213 = vmatpush1.msra.mxu0 0.0
    %214 = vmatprep.subr.mxu0 0.0
    %215 = vmatpush1.msra.mxu0 0.0
    %216 = vmatprep.subr.mxu0 0.0
    %217 = vmatpush1.msra.mxu0 0.0
    %218 = vmatprep.subr.mxu0 0.0
    %219 = vmatpush1.msra.mxu0 0.0
    %220 = vmatprep.subr.mxu0 0.0
    %221 = vmatpush1.msra.mxu0 0.0
    %222 = vmatprep.subr.mxu0 0.0
    %223 = vmatpush1.msra.mxu0 0.0
    %224 = vmatprep.subr.mxu0 0.0
    %225 = vmatpush1.msra.mxu0 0.0
    %226 = vmatprep.subr.mxu0 0.0
    %227 = vmatpush1.msra.mxu0 0.0
    %228 = vmatprep.subr.mxu0 0.0
    %229 = vmatpush1.msra.mxu0 0.0
    %230 = vmatprep.subr.mxu0 0.0
    %231 = vmatpush1.msra.mxu0 0.0
    %232 = vmatprep.subr.mxu0 0.0
    %233 = vmatpush1.msra.mxu0 0.0
    %234 = vmatprep.subr.mxu0 0.0
    %235 = vmatpush1.msra.mxu0 0.0
    %236 = vmatprep.subr.mxu0 0.0
    %237 = vmatpush1.msra.mxu0 0.0
    %238 = vmatprep.subr.mxu0 0.0
    %239 = vmatpush1.msra.mxu0 0.0
    %240 = vmatprep.subr.mxu0 0.0
    %241 = vmatpush1.msra.mxu0 0.0
    %242 = vmatprep.subr.mxu0 0.0
    %243 = vmatpush1.msra.mxu0 0.0
    %244 = vmatprep.subr.mxu0 0.0
    %245 = vmatpush1.msra.mxu0 0.0
    %246 = vmatprep.subr.mxu0 0.0
    %247 = vmatpush1.msra.mxu0 0.0
    %248 = vmatprep.mubr.f32.mxu0 0.0
    %249 = vmatmul.mubr.f32.gmra.mrb[0].mxu0 %v179
    %v250 = vpop.f32.mrb[0].mxu0
    %v251 = vadd.f32 %v176, %v250
    %v252 = vpop.f32.mrb[0].mxu0
    %253 = vmatprep.mubr.f32.mxu0 0.0
    %254 = vmatmul.mubr.f32.gmra.mrb[0].mxu0 %v182
    %v255 = vpop.f32.mrb[0].mxu0
    %v256 = vadd.f32 %v176, %v255
    %v257 = vpop.f32.mrb[0].mxu0
    %258 = vdwg.mxu0
    %259 = vst.msk [vmem:[#allocation8] sm:$0xff] %vm75, %v251
    %260 = vst.msk [vmem:[#allocation8 + $0x8] sm:$0xff] %vm75, %v256
    // Predicated region
    $region34: #{tpu_custom_call.1} parent=1 // pred_check
      _
    $region35: #{tpu_custom_call.1} parent=1 // pred_check_branch
      %262 = sbr.rel (0) target = $region37
    $region36: #{tpu_custom_call.1} parent=1 // pred_region
      %s264 = ssub.s32 256, 256
      %265 = vsyncadd [#allocation4], %s264
      %s266 = sshll.u32 [#allocation8], 4
      %s267 = int_to_ptr.vmem [resolvable:$true] %s266
      %272 = dma.vmem_to_hbm [thread:$0]  %s267, 256, %s5, [#allocation4], 128, 128, 8
    $region37: #{tpu_custom_call.1} parent=1 // pred_fallthru
      _
    // Predicated region
    $region38: #{tpu_custom_call.1} parent=1 // pred_check
      _
    $region39: #{tpu_custom_call.1} parent=1 // pred_check_branch
      %274 = sbr.rel (0) target = $region41
    $region40: #{tpu_custom_call.1} parent=1 // pred_region
      %275 = dma.done [#allocation4], 256
    $region41: #{tpu_custom_call.1} parent=1 // pred_fallthru
      _
    %276 = vsyncpa [#allocation3], 1
    %277 = vsyncpa [#allocation6], 1
    %278 = vsyncpa [#allocation4], 1

// kernel: tpu_custom_call.1
$region0: #{tpu_custom_call.1}
  #allocation0 [shape = 'u32[]', space=smem, size = 0x4, offset = 0x4, fixed_abs, tag = 'smem constant byte address 0x4 - core index']
  #allocation1 [shape = 'u32[144,128]{1,0:T(1,128)}', space=vmem, size = 0x12000, scoped, tag = 'internal scratch']
  %s0 = inlined_call_operand.hbm [shape: f32[16,32], index: 0, kind: input, shape index: {}]
  %s1 = inlined_call_operand.hbm [shape: f32[32,32], index: 1, kind: input, shape index: {}]
  %s2 = inlined_call_operand.vmem [shape: f32[1,32], index: 2, kind: input, shape index: {}]
  %s3 = inlined_call_operand.hbm [shape: f32[32,32], index: 3, kind: input, shape index: {}]
  %s4 = inlined_call_operand.vmem [shape: f32[1,32], index: 4, kind: input, shape index: {}]
  %s5 = inlined_call_operand.hbm [shape: f32[16,32], index: 5, kind: output, shape index: {}]
  %s6 = sld [smem:[#allocation0]]
  $region42: #{tpu_custom_call.1} parent=0
    _
  %s8 = ssub.s32 1, %s6
  %s9 = scalar_select 0, %s8, %s6
  $region1: #{tpu_custom_call.1} parent=0
    #allocation2 [shape = 'u8[8192]{0}', space=vmem, size = 0x2000, scoped, tag = 'input window, operand 0, single buffered']
    #allocation3 [shape = 's32[1]{0}', space=sflag, size = 0x4, scoped, tag = 'scoped memory for tpu_custom_call.1']
    #allocation4 [shape = 's32[1]{0}', space=sflag, size = 0x4, scoped, tag = 'scoped memory for tpu_custom_call.1']
    #allocation5 [shape = 'u8[16384]{0}', space=vmem, size = 0x4000, scoped, tag = 'input window, operand 1, single buffered']
    #allocation6 [shape = 's32[1]{0}', space=sflag, size = 0x4, scoped, tag = 'scoped memory for tpu_custom_call.1']
    #allocation7 [shape = 'u8[16384]{0}', space=vmem, size = 0x4000, scoped, tag = 'input window, operand 3, single buffered']
    #allocation8 [shape = 'u8[8192]{0}', space=vmem, size = 0x2000, scoped, tag = 'output window, operand 0, single buffered']
    %10 = vsyncpa [#allocation3], 0
    %11 = vsyncpa [#allocation6], 0
    %12 = vsyncpa [#allocation4], 0
    // Predicated region
    $region2: #{tpu_custom_call.1} parent=1 // pred_check
      _
    $region3: #{tpu_custom_call.1} parent=1 // pred_check_branch
      %14 = sbr.rel (0) target = $region5
    $region4: #{tpu_custom_call.1} parent=1 // pred_region
      %s16 = ssub.s32 256, 256
      %17 = vsyncadd [#allocation3], %s16
      %s18 = sshll.u32 [#allocation2], 4
      %s19 = int_to_ptr.vmem [resolvable:$true] %s18
      %24 = dma.hbm_to_vmem [thread:$0]  %s0, 256, %s19, [#allocation3], 128, 128, 8
    $region5: #{tpu_custom_call.1} parent=1 // pred_fallthru
      _
    // Predicated region
    $region6: #{tpu_custom_call.1} parent=1 // pred_check
      _
    $region7: #{tpu_custom_call.1} parent=1 // pred_check_branch
      %26 = sbr.rel (0) target = $region9
    $region8: #{tpu_custom_call.1} parent=1 // pred_region
      %s28 = ssub.s32 512, 512
      %29 = vsyncadd [#allocation6], %s28
      %s30 = sshll.u32 [#allocation5], 4
      %s31 = int_to_ptr.vmem [resolvable:$true] %s30
      %36 = dma.hbm_to_vmem [thread:$0]  %s1, 512, %s31, [#allocation6], 128, 128, 8
    $region9: #{tpu_custom_call.1} parent=1 // pred_fallthru
      _
    // Predicated region
    $region10: #{tpu_custom_call.1} parent=1 // pred_check
      _
    $region11: #{tpu_custom_call.1} parent=1 // pred_check_branch
      %38 = sbr.rel (0) target = $region13
    $region12: #{tpu_custom_call.1} parent=1 // pred_region
      _
    $region13: #{tpu_custom_call.1} parent=1 // pred_fallthru
      _
    // Predicated region
    $region14: #{tpu_custom_call.1} parent=1 // pred_check
      _
    $region15: #{tpu_custom_call.1} parent=1 // pred_check_branch
      %40 = sbr.rel (0) target = $region17
    $region16: #{tpu_custom_call.1} parent=1 // pred_region
      %s42 = ssub.s32 512, 512
      %43 = vsyncadd [#allocation6], %s42
      %s44 = sshll.u32 [#allocation7], 4
      %s45 = int_to_ptr.vmem [resolvable:$true] %s44
      %50 = dma.hbm_to_vmem [thread:$0]  %s3, 512, %s45, [#allocation6], 128, 128, 8
    $region17: #{tpu_custom_call.1} parent=1 // pred_fallthru
      _
    // Predicated region
    $region18: #{tpu_custom_call.1} parent=1 // pred_check
      _
    $region19: #{tpu_custom_call.1} parent=1 // pred_check_branch
      %52 = sbr.rel (0) target = $region21
    $region20: #{tpu_custom_call.1} parent=1 // pred_region
      _
    $region21: #{tpu_custom_call.1} parent=1 // pred_fallthru
      _
    // Predicated region
    $region22: #{tpu_custom_call.1} parent=1 // pred_check
      _
    $region23: #{tpu_custom_call.1} parent=1 // pred_check_branch
      %54 = sbr.rel (0) target = $region25
    $region24: #{tpu_custom_call.1} parent=1 // pred_region
      %55 = dma.done [#allocation3], 256
    $region25: #{tpu_custom_call.1} parent=1 // pred_fallthru
      _
    // Predicated region
    $region26: #{tpu_custom_call.1} parent=1 // pred_check
      _
    $region27: #{tpu_custom_call.1} parent=1 // pred_check_branch
      %57 = sbr.rel (0) target = $region29
    $region28: #{tpu_custom_call.1} parent=1 // pred_region
      %58 = dma.done [#allocation6], 512
    $region29: #{tpu_custom_call.1} parent=1 // pred_fallthru
      _
    // Predicated region
    $region30: #{tpu_custom_call.1} parent=1 // pred_check
      _
    $region31: #{tpu_custom_call.1} parent=1 // pred_check_branch
      %60 = sbr.rel (0) target = $region33
    $region32: #{tpu_custom_call.1} parent=1 // pred_region
      %61 = dma.done [#allocation6], 512
    $region33: #{tpu_custom_call.1} parent=1 // pred_fallthru
      _
    %v62 = vld [vmem:[#allocation2] sm:$0xff]
    %v63 = vld [vmem:[#allocation2 + $0x8] sm:$0xff]
    %v64 = vld [vmem:[#allocation5] sm:$0xff]
    %v65 = vld [vmem:[#allocation5 + $0x8] sm:$0xff]
    %v66 = vld [vmem:[#allocation5 + $0x10] sm:$0xff]
    %v67 = vld [vmem:[#allocation5 + $0x18] sm:$0xff]
    %v68 = vld [vmem:[%s2] sm:$0x1]
    %v70 = vlaneseq
    %v71 = vshrl.u32 %v70, 7
    %v72 = vsub.s32 0, %v71
    %v73 = vrot.slane %v68, %v72
    %vm75 = vcmask 261120
    %v77 = vsel %vm75, %v62, 0
    %v80 = vsel %vm75, %v63, 0
    %82 = vmatprep.subr.mxu0 0.0
    %83 = vmatpush1.msra.mxu0 %v64
    %84 = vmatprep.subr.mxu0 0.0
    %85 = vmatpush1.msra.mxu0 %v65
    %86 = vmatprep.subr.mxu0 0.0
    %87 = vmatpush1.msra.mxu0 %v66
    %88 = vmatprep.subr.mxu0 0.0
    %89 = vmatpush1.msra.mxu0 %v67
    %90 = vmatprep.subr.mxu0 0.0
    %91 = vmatpush1.msra.mxu0 0.0
    %92 = vmatprep.subr.mxu0 0.0
    %93 = vmatpush1.msra.mxu0 0.0
    %94 = vmatprep.subr.mxu0 0.0
    %95 = vmatpush1.msra.mxu0 0.0
    %96 = vmatprep.subr.mxu0 0.0
    %97 = vmatpush1.msra.mxu0 0.0
    %98 = vmatprep.subr.mxu0 0.0
    %99 = vmatpush1.msra.mxu0 0.0
    %100 = vmatprep.subr.mxu0 0.0
    %101 = vmatpush1.msra.mxu0 0.0
    %102 = vmatprep.subr.mxu0 0.0
    %103 = vmatpush1.msra.mxu0 0.0
    %104 = vmatprep.subr.mxu0 0.0
    %105 = vmatpush1.msra.mxu0 0.0
    %106 = vmatprep.subr.mxu0 0.0
    %107 = vmatpush1.msra.mxu0 0.0
    %108 = vmatprep.subr.mxu0 0.0
    %109 = vmatpush1.msra.mxu0 0.0
    %110 = vmatprep.subr.mxu0 0.0
    %111 = vmatpush1.msra.mxu0 0.0
    %112 = vmatprep.subr.mxu0 0.0
    %113 = vmatpush1.msra.mxu0 0.0
    %114 = vmatprep.subr.mxu0 0.0
    %115 = vmatpush1.msra.mxu0 0.0
    %116 = vmatprep.subr.mxu0 0.0
    %117 = vmatpush1.msra.mxu0 0.0
    %118 = vmatprep.subr.mxu0 0.0
    %119 = vmatpush1.msra.mxu0 0.0
    %120 = vmatprep.subr.mxu0 0.0
    %121 = vmatpush1.msra.mxu0 0.0
    %122 = vmatprep.subr.mxu0 0.0
    %123 = vmatpush1.msra.mxu0 0.0
    %124 = vmatprep.subr.mxu0 0.0
    %125 = vmatpush1.msra.mxu0 0.0
    %126 = vmatprep.subr.mxu0 0.0
    %127 = vmatpush1.msra.mxu0 0.0
    %128 = vmatprep.subr.mxu0 0.0
    %129 = vmatpush1.msra.mxu0 0.0
    %130 = vmatprep.subr.mxu0 0.0
    %131 = vmatpush1.msra.mxu0 0.0
    %132 = vmatprep.subr.mxu0 0.0
    %133 = vmatpush1.msra.mxu0 0.0
    %134 = vmatprep.subr.mxu0 0.0
    %135 = vmatpush1.msra.mxu0 0.0
    %136 = vmatprep.subr.mxu0 0.0
    %137 = vmatpush1.msra.mxu0 0.0
    %138 = vmatprep.subr.mxu0 0.0
    %139 = vmatpush1.msra.mxu0 0.0
    %140 = vmatprep.subr.mxu0 0.0
    %141 = vmatpush1.msra.mxu0 0.0
    %142 = vmatprep.subr.mxu0 0.0
    %143 = vmatpush1.msra.mxu0 0.0
    %144 = vmatprep.subr.mxu0 0.0
    %145 = vmatpush1.msra.mxu0 0.0
    %146 = vmatprep.mubr.f32.mxu0 0.0
    %147 = vmatmul.mubr.f32.gmra.mrb[0].mxu0 %v77
    %v148 = vpop.f32.mrb[0].mxu0
    %v149 = vadd.f32 %v73, %v148
    %v150 = vpop.f32.mrb[0].mxu0
    %151 = vmatprep.mubr.f32.mxu0 0.0
    %152 = vmatmul.mubr.f32.gmra.mrb[0].mxu0 %v80
    %v153 = vpop.f32.mrb[0].mxu0
    %v154 = vadd.f32 %v73, %v153
    %v155 = vpop.f32.mrb[0].mxu0
    %156 = vdwg.mxu0
    %v157 = vmul.f32 %v149, 0.5
    %v158 = vmul.f32 %v154, 0.5
    %v159 = vmul.f32 %v149, 0.70710677
    %v160 = vmul.f32 %v154, 0.70710677
    %v161 = verf.f32.pop %v159
    %v162 = verf.f32.pop %v160
    %v163 = vadd.f32 %v161, 1.0
    %v164 = vadd.f32 %v162, 1.0
    %v165 = vmul.f32 %v157, %v163
    %v166 = vmul.f32 %v158, %v164
    %v167 = vld [vmem:[#allocation7] sm:$0xff]
    %v168 = vld [vmem:[#allocation7 + $0x8] sm:$0xff]
    %v169 = vld [vmem:[#allocation7 + $0x10] sm:$0xff]
    %v170 = vld [vmem:[#allocation7 + $0x18] sm:$0xff]
    %v171 = vld [vmem:[%s4] sm:$0x1]
    %v173 = vlaneseq
    %v174 = vshrl.u32 %v173, 7
    %v175 = vsub.s32 0, %v174
    %v176 = vrot.slane %v171, %v175
    %v179 = vsel %vm75, %v165, 0
    %v182 = vsel %vm75, %v166, 0
    %184 = vmatprep.subr.mxu0 0.0
    %185 = vmatpush1.msra.mxu0 %v167
    %186 = vmatprep.subr.mxu0 0.0
    %187 = vmatpush1.msra.mxu0 %v168
    %188 = vmatprep.subr.mxu0 0.0
    %189 = vmatpush1.msra.mxu0 %v169
    %190 = vmatprep.subr.mxu0 0.0
    %191 = vmatpush1.msra.mxu0 %v170
    %192 = vmatprep.subr.mxu0 0.0
    %193 = vmatpush1.msra.mxu0 0.0
    %194 = vmatprep.subr.mxu0 0.0
    %195 = vmatpush1.msra.mxu0 0.0
    %196 = vmatprep.subr.mxu0 0.0
    %197 = vmatpush1.msra.mxu0 0.0
    %198 = vmatprep.subr.mxu0 0.0
    %199 = vmatpush1.msra.mxu0 0.0
    %200 = vmatprep.subr.mxu0 0.0
    %201 = vmatpush1.msra.mxu0 0.0
    %202 = vmatprep.subr.mxu0 0.0
    %203 = vmatpush1.msra.mxu0 0.0
    %204 = vmatprep.subr.mxu0 0.0
    %205 = vmatpush1.msra.mxu0 0.0
    %206 = vmatprep.subr.mxu0 0.0
    %207 = vmatpush1.msra.mxu0 0.0
    %208 = vmatprep.subr.mxu0 0.0
    %209 = vmatpush1.msra.mxu0 0.0
    %210 = vmatprep.subr.mxu0 0.0
    %211 = vmatpush1.msra.mxu0 0.0
    %212 = vmatprep.subr.mxu0 0.0
    %213 = vmatpush1.msra.mxu0 0.0
    %214 = vmatprep.subr.mxu0 0.0
    %215 = vmatpush1.msra.mxu0 0.0
    %216 = vmatprep.subr.mxu0 0.0
    %217 = vmatpush1.msra.mxu0 0.0
    %218 = vmatprep.subr.mxu0 0.0
    %219 = vmatpush1.msra.mxu0 0.0
    %220 = vmatprep.subr.mxu0 0.0
    %221 = vmatpush1.msra.mxu0 0.0
    %222 = vmatprep.subr.mxu0 0.0
    %223 = vmatpush1.msra.mxu0 0.0
    %224 = vmatprep.subr.mxu0 0.0
    %225 = vmatpush1.msra.mxu0 0.0
    %226 = vmatprep.subr.mxu0 0.0
    %227 = vmatpush1.msra.mxu0 0.0
    %228 = vmatprep.subr.mxu0 0.0
    %229 = vmatpush1.msra.mxu0 0.0
    %230 = vmatprep.subr.mxu0 0.0
    %231 = vmatpush1.msra.mxu0 0.0
    %232 = vmatprep.subr.mxu0 0.0
    %233 = vmatpush1.msra.mxu0 0.0
    %234 = vmatprep.subr.mxu0 0.0
    %235 = vmatpush1.msra.mxu0 0.0
    %236 = vmatprep.subr.mxu0 0.0
    %237 = vmatpush1.msra.mxu0 0.0
    %238 = vmatprep.subr.mxu0 0.0
    %239 = vmatpush1.msra.mxu0 0.0
    %240 = vmatprep.subr.mxu0 0.0
    %241 = vmatpush1.msra.mxu0 0.0
    %242 = vmatprep.subr.mxu0 0.0
    %243 = vmatpush1.msra.mxu0 0.0
    %244 = vmatprep.subr.mxu0 0.0
    %245 = vmatpush1.msra.mxu0 0.0
    %246 = vmatprep.subr.mxu0 0.0
    %247 = vmatpush1.msra.mxu0 0.0
    %248 = vmatprep.mubr.f32.mxu0 0.0
    %249 = vmatmul.mubr.f32.gmra.mrb[0].mxu0 %v179
    %v250 = vpop.f32.mrb[0].mxu0
    %v251 = vadd.f32 %v176, %v250
    %v252 = vpop.f32.mrb[0].mxu0
    %253 = vmatprep.mubr.f32.mxu0 0.0
    %254 = vmatmul.mubr.f32.gmra.mrb[0].mxu0 %v182
    %v255 = vpop.f32.mrb[0].mxu0
    %v256 = vadd.f32 %v176, %v255
    %v257 = vpop.f32.mrb[0].mxu0
    %258 = vdwg.mxu0
    %259 = vst.msk [vmem:[#allocation8] sm:$0xff] %vm75, %v251
    %260 = vst.msk [vmem:[#allocation8 + $0x8] sm:$0xff] %vm75, %v256
    // Predicated region
    $region34: #{tpu_custom_call.1} parent=1 // pred_check
      _
    $region35: #{tpu_custom_call.1} parent=1 // pred_check_branch
      %262 = sbr.rel (0) target = $region37
    $region36: #{tpu_custom_call.1} parent=1 // pred_region
      %s264 = ssub.s32 256, 256
      %265 = vsyncadd [#allocation4], %s264
      %s266 = sshll.u32 [#allocation8], 4
      %s267 = int_to_ptr.vmem [resolvable:$true] %s266
      %272 = dma.vmem_to_hbm [thread:$0]  %s267, 256, %s5, [#allocation4], 128, 128, 8
    $region37: #{tpu_custom_call.1} parent=1 // pred_fallthru
      _
    // Predicated region
    $region38: #{tpu_custom_call.1} parent=1 // pred_check
      _
    $region39: #{tpu_custom_call.1} parent=1 // pred_check_branch
      %274 = sbr.rel (0) target = $region41
    $region40: #{tpu_custom_call.1} parent=1 // pred_region
      %275 = dma.done [#allocation4], 256
    $region41: #{tpu_custom_call.1} parent=1 // pred_fallthru
      _
    %276 = vsyncpa [#allocation3], 1
    %277 = vsyncpa [#allocation6], 1
    %278 = vsyncpa [#allocation4], 1

</llo_original>
